<compile_context>
chip_gen: v5e
topology: v5e:2x2
jax: 0.10.0
libtpu: 0.0.40
codegen_flags: <defaults>
</compile_context>

<pallas_src>
import jax
import jax.numpy as jnp
from jax.experimental import pallas as pl
from jax.experimental.pallas import tpu as pltpu


def _mlp_kernel(x_ref, w1_ref, b1_ref, w2_ref, b2_ref, w3_ref, b3_ref, o_ref):
    # x_ref: (Bt, 8) tile in the array's native batch-major layout.
    # Transpose on the XLU (idle here, hidden under the HBM DMA) so everything
    # downstream is lane-dense: features on sublanes, batch on lanes.
    xT = x_ref[...].T                                        # (8, Bt)
    # net[0]: Linear(8, 16) + ReLU           (16, 8) @ (8, Bt) -> (16, Bt)
    h1 = jnp.dot(w1_ref[...], xT, preferred_element_type=jnp.float32)
    h1 = jnp.maximum(h1 + b1_ref[...], 0.0)
    # net[2]: Linear(16, 8) + outer F.relu   (8, 16) @ (16, Bt) -> (8, Bt)
    h2 = jnp.dot(w2_ref[...], h1.astype(w2_ref.dtype),
                 preferred_element_type=jnp.float32)
    h2 = jnp.maximum(h2 + b2_ref[...], 0.0)
    # out: Linear(8, 4)                      (4, 8) @ (8, Bt) -> (4, Bt)
    y = jnp.dot(w3_ref[...], h2.astype(w3_ref.dtype),
                preferred_element_type=jnp.float32) + b3_ref[...]
    o_ref[...] = y.astype(o_ref.dtype)


def net_forward(x, params, *, batch_tile=8192, batch_major_output=True):
    """Forward pass of `Net`: out(relu(net(x))).

    x: (B, 8).  Returns (B, 4) (nn.Linear semantics) by default, or the
    lane-dense (4, B) slab when batch_major_output=False (saves one HBM pass).
    """
    B, D_in = x.shape
    assert D_in == 8
    assert batch_tile % 128 == 0, "batch_tile must be a multiple of 128"

    dt = x.dtype
    # Single dtype policy: weights follow x's dtype (tiny + VMEM-resident).
    w1, b1 = params["w1"].astype(dt), params["b1"].astype(dt)   # (16, 8), (16, 1)
    w2, b2 = params["w2"].astype(dt), params["b2"].astype(dt)   # (8, 16), (8, 1)
    w3, b3 = params["w3"].astype(dt), params["b3"].astype(dt)   # (4, 8),  (4, 1)

    # Tile selection: as large as requested, but (a) no larger than the
    # lane-aligned batch cover and (b) kept to >= 2 grid steps when possible so
    # the "parallel" axis gives both v7x TensorCores work (no-op on v5e/v6e).
    cover = pl.cdiv(B, 128) * 128
    tile = min(batch_tile, cover)
    if cover >= 256:
        half = pl.cdiv(pl.cdiv(cover, 2), 128) * 128
        tile = min(tile, half)
    tile = max(tile, 128)
    grid = (pl.cdiv(B, tile),)

    itemsize = jnp.dtype(dt).itemsize
    param_bytes = sum(int(a.size) * itemsize for a in (w1, b1, w2, b2, w3, b3))
    cost = pl.CostEstimate(
        flops=2 * B * (16 * 8 + 8 * 16 + 4 * 8),
        transcendentals=0,
        bytes_accessed=B * 8 * itemsize + B * 4 * itemsize + param_bytes,
    )

    resident = lambda arr: pl.BlockSpec(arr.shape, lambda i: (0, 0))

    def build_and_run(extra_buffering):
        # Triple-buffer only the streamed arrays (x and the output).
        stream_kwargs = {"pipeline_mode": pl.Buffered(3)} if extra_buffering else {}
        return pl.pallas_call(
            _mlp_kernel,
            out_shape=jax.ShapeDtypeStruct((4, B), dt),
            grid=grid,
            in_specs=[
                pl.BlockSpec((tile, 8), lambda i: (i, 0), **stream_kwargs),
                resident(w1), resident(b1),
                resident(w2), resident(b2),
                resident(w3), resident(b3),
            ],
            out_specs=pl.BlockSpec((4, tile), lambda i: (0, i), **stream_kwargs),
            compiler_params=pltpu.CompilerParams(
                dimension_semantics=("parallel",),
            ),
            cost_estimate=cost,
        )(x, w1, b1, w2, b2, w3, b3)

    try:
        outT = build_and_run(True)
    except Exception:
        # Older jaxlib without pipeline_mode multi-buffering support.
        outT = build_and_run(False)

    if batch_major_output:
        # One extra HBM pass over the (4, B) result; skip with
        # batch_major_output=False if the consumer accepts (features, batch).
        return outT.T
    return outT


def init_params(key, dtype=jnp.float32):
    """Mimics nn.Linear init: U(-1/sqrt(fan_in), 1/sqrt(fan_in)).
    Weights in PyTorch layout (out_features, in_features); biases (out, 1)."""
    def linear_init(k, fan_in, fan_out):
        kw, kb = jax.random.split(k)
        bound = 1.0 / jnp.sqrt(fan_in)
        w = jax.random.uniform(kw, (fan_out, fan_in), jnp.float32, -bound, bound)
        b = jax.random.uniform(kb, (fan_out, 1), jnp.float32, -bound, bound)
        return w.astype(dtype), b.astype(dtype)

    k1, k2, k3 = jax.random.split(key, 3)
    w1, b1 = linear_init(k1, 8, 16)
    w2, b2 = linear_init(k2, 16, 8)
    w3, b3 = linear_init(k3, 8, 4)
    return dict(w1=w1, b1=b1, w2=w2, b2=b2, w3=w3, b3=b3)


def net_forward_ref(x, p):
    h1 = jnp.maximum(x @ p["w1"].T + p["b1"].T, 0.0)
    h2 = jnp.maximum(h1 @ p["w2"].T + p["b2"].T, 0.0)
    return h2 @ p["w3"].T + p["b3"].T


if __name__ == "__main__":
    key = jax.random.PRNGKey(0)
    kx, kp = jax.random.split(key)
    params = init_params(kp)

    # Case 1: lane-aligned batch -> 2-step grid (both TensorCores on v7x).
    B = 256
    x = jax.random.normal(kx, (B, 8), jnp.float32)
    out = jax.block_until_ready(net_forward(x, params))
    ref = net_forward_ref(x, params)
    assert out.shape == (B, 4), out.shape
    assert jnp.allclose(out, ref, atol=1e-5, rtol=1e-5), "f32 mismatch vs reference"

    # Case 2: ragged batch -> no wrapper-side pad; Pallas drops OOB block writes.
    B2 = 300
    x2 = jax.random.normal(kx, (B2, 8), jnp.float32)
    out2 = jax.block_until_ready(net_forward(x2, params))
    ref2 = net_forward_ref(x2, params)
    assert out2.shape == (B2, 4), out2.shape
    assert jnp.allclose(out2, ref2, atol=1e-5, rtol=1e-5), "ragged-batch mismatch"

    # Case 3: bf16 I/O (preferred for this bandwidth-bound kernel) with the
    # lane-dense (4, B) output layout that skips the trailing HBM transpose.
    out3 = jax.block_until_ready(
        net_forward(x.astype(jnp.bfloat16), params, batch_major_output=False))
    assert out3.shape == (4, B), out3.shape
    assert jnp.allclose(out3.T.astype(jnp.float32), ref, atol=5e-2, rtol=5e-2), \
        "bf16 mismatch vs reference"

    print("KERNEL_OK")
</pallas_src>

<mosaic_0001>
module attributes {stable_mosaic.version = 11 : i64} {
  func.func @_mlp_kernel(%arg0: i32, %arg1: memref<128x8xf32, #tpu.memory_space<vmem>>, %arg2: memref<16x8xf32, #tpu.memory_space<vmem>>, %arg3: memref<16x1xf32, #tpu.memory_space<vmem>>, %arg4: memref<8x16xf32, #tpu.memory_space<vmem>>, %arg5: memref<8x1xf32, #tpu.memory_space<vmem>>, %arg6: memref<4x8xf32, #tpu.memory_space<vmem>>, %arg7: memref<4x1xf32, #tpu.memory_space<vmem>>, %arg8: memref<4x128xf32, #tpu.memory_space<vmem>>) attributes {dimension_semantics = [#tpu.dimension_semantics<parallel>], iteration_bounds = array<i64: 2>, scalar_prefetch = 0 : i64, scratch_operands = 0 : i64, tpu.core_type = #tpu.core_type<tc>, window_params = [{transform_indices = @transform_0, window_bounds = array<i64: 128, 8>}, {pipeline_mode = #tpu.pipeline_mode<synchronous>, transform_indices = @transform_1, window_bounds = array<i64: 16, 8>}, {pipeline_mode = #tpu.pipeline_mode<synchronous>, transform_indices = @transform_2, window_bounds = array<i64: 16, 1>}, {pipeline_mode = #tpu.pipeline_mode<synchronous>, transform_indices = @transform_3, window_bounds = array<i64: 8, 16>}, {pipeline_mode = #tpu.pipeline_mode<synchronous>, transform_indices = @transform_4, window_bounds = array<i64: 8, 1>}, {pipeline_mode = #tpu.pipeline_mode<synchronous>, transform_indices = @transform_5, window_bounds = array<i64: 4, 8>}, {pipeline_mode = #tpu.pipeline_mode<synchronous>, transform_indices = @transform_6, window_bounds = array<i64: 4, 1>}, {transform_indices = @transform_7, window_bounds = array<i64: 4, 128>}]} {
    %c0 = arith.constant 0 : index
    %c0_0 = arith.constant 0 : index
    %0 = vector.load %arg1[%c0, %c0_0] : memref<128x8xf32, #tpu.memory_space<vmem>>, vector<128x8xf32>
    %1 = tpu.transpose %0, [1, 0] : vector<128x8xf32> -> vector<8x128xf32>
    %c0_1 = arith.constant 0 : index
    %c0_2 = arith.constant 0 : index
    %2 = vector.load %arg2[%c0_1, %c0_2] : memref<16x8xf32, #tpu.memory_space<vmem>>, vector<16x8xf32>
    %cst = arith.constant dense<0.000000e+00> : vector<16x128xf32>
    %3 = tpu.matmul %2, %1, %cst {dimension_numbers = #tpu.dot_dimension_numbers<[1], [0], [0], [1], [0, 0, 1, 1], [], []>} : vector<16x8xf32>, vector<8x128xf32>, vector<16x128xf32> -> vector<16x128xf32>
    %c0_3 = arith.constant 0 : index
    %c0_4 = arith.constant 0 : index
    %4 = vector.load %arg3[%c0_3, %c0_4] : memref<16x1xf32, #tpu.memory_space<vmem>>, vector<16x1xf32>
    %5 = vector.broadcast %4 : vector<16x1xf32> to vector<16x128xf32>
    %6 = arith.addf %3, %5 : vector<16x128xf32>
    %cst_5 = arith.constant 0.000000e+00 : f32
    %7 = vector.broadcast %cst_5 : f32 to vector<16x128xf32>
    %8 = arith.maximumf %6, %7 : vector<16x128xf32>
    %c0_6 = arith.constant 0 : index
    %c0_7 = arith.constant 0 : index
    %9 = vector.load %arg4[%c0_6, %c0_7] : memref<8x16xf32, #tpu.memory_space<vmem>>, vector<8x16xf32>
    %cst_8 = arith.constant dense<0.000000e+00> : vector<8x128xf32>
    %10 = tpu.matmul %9, %8, %cst_8 {dimension_numbers = #tpu.dot_dimension_numbers<[1], [0], [0], [1], [0, 0, 1, 1], [], []>} : vector<8x16xf32>, vector<16x128xf32>, vector<8x128xf32> -> vector<8x128xf32>
    %c0_9 = arith.constant 0 : index
    %c0_10 = arith.constant 0 : index
    %11 = vector.load %arg5[%c0_9, %c0_10] : memref<8x1xf32, #tpu.memory_space<vmem>>, vector<8x1xf32>
    %12 = vector.broadcast %11 : vector<8x1xf32> to vector<8x128xf32>
    %13 = arith.addf %10, %12 : vector<8x128xf32>
    %cst_11 = arith.constant 0.000000e+00 : f32
    %14 = vector.broadcast %cst_11 : f32 to vector<8x128xf32>
    %15 = arith.maximumf %13, %14 : vector<8x128xf32>
    %c0_12 = arith.constant 0 : index
    %c0_13 = arith.constant 0 : index
    %16 = vector.load %arg6[%c0_12, %c0_13] : memref<4x8xf32, #tpu.memory_space<vmem>>, vector<4x8xf32>
    %cst_14 = arith.constant dense<0.000000e+00> : vector<4x128xf32>
    %17 = tpu.matmul %16, %15, %cst_14 {dimension_numbers = #tpu.dot_dimension_numbers<[1], [0], [0], [1], [0, 0, 1, 1], [], []>} : vector<4x8xf32>, vector<8x128xf32>, vector<4x128xf32> -> vector<4x128xf32>
    %c0_15 = arith.constant 0 : index
    %c0_16 = arith.constant 0 : index
    %18 = vector.load %arg7[%c0_15, %c0_16] : memref<4x1xf32, #tpu.memory_space<vmem>>, vector<4x1xf32>
    %19 = vector.broadcast %18 : vector<4x1xf32> to vector<4x128xf32>
    %20 = arith.addf %17, %19 : vector<4x128xf32>
    %c0_17 = arith.constant 0 : index
    %c0_18 = arith.constant 0 : index
    %21 = vector.load %arg8[%c0_17, %c0_18] : memref<4x128xf32, #tpu.memory_space<vmem>>, vector<4x128xf32>
    tpu.vector_store %arg8[%c0_17, %c0_18], %20 {strides = array<i32>} : memref<4x128xf32, #tpu.memory_space<vmem>>, vector<4x128xf32>,
    return
  }
  func.func @transform_0(%arg0: i32) -> (i32, i32) {
    %c0_i32 = arith.constant 0 : i32
    %c0_i32_0 = arith.constant 0 : i32
    return %arg0, %c0_i32 : i32, i32
  }
  func.func @transform_1(%arg0: i32) -> (i32, i32) {
    %c0_i32 = arith.constant 0 : i32
    %c0_i32_0 = arith.constant 0 : i32
    %c0_i32_1 = arith.constant 0 : i32
    return %c0_i32, %c0_i32_0 : i32, i32
  }
  func.func @transform_2(%arg0: i32) -> (i32, i32) {
    %c0_i32 = arith.constant 0 : i32
    %c0_i32_0 = arith.constant 0 : i32
    %c0_i32_1 = arith.constant 0 : i32
    return %c0_i32, %c0_i32_0 : i32, i32
  }
  func.func @transform_3(%arg0: i32) -> (i32, i32) {
    %c0_i32 = arith.constant 0 : i32
    %c0_i32_0 = arith.constant 0 : i32
    %c0_i32_1 = arith.constant 0 : i32
    return %c0_i32, %c0_i32_0 : i32, i32
  }
  func.func @transform_4(%arg0: i32) -> (i32, i32) {
    %c0_i32 = arith.constant 0 : i32
    %c0_i32_0 = arith.constant 0 : i32
    %c0_i32_1 = arith.constant 0 : i32
    return %c0_i32, %c0_i32_0 : i32, i32
  }
  func.func @transform_5(%arg0: i32) -> (i32, i32) {
    %c0_i32 = arith.constant 0 : i32
    %c0_i32_0 = arith.constant 0 : i32
    %c0_i32_1 = arith.constant 0 : i32
    return %c0_i32, %c0_i32_0 : i32, i32
  }
  func.func @transform_6(%arg0: i32) -> (i32, i32) {
    %c0_i32 = arith.constant 0 : i32
    %c0_i32_0 = arith.constant 0 : i32
    %c0_i32_1 = arith.constant 0 : i32
    return %c0_i32, %c0_i32_0 : i32, i32
  }
  func.func @transform_7(%arg0: i32) -> (i32, i32) {
    %c0_i32 = arith.constant 0 : i32
    %c0_i32_0 = arith.constant 0 : i32
    return %c0_i32, %arg0 : i32, i32
  }
}

</mosaic_0001>

<llo_original>
// kernel: tpu_custom_call.1
$region0: #{tpu_custom_call.1}
  #allocation0 [shape = 'u32[]', space=smem, size = 0x4, offset = 0x4, fixed_abs, tag = 'smem constant byte address 0x4 - core index']
  #allocation1 [shape = 'u32[72,128]{1,0:T(1,128)}', space=vmem, size = 0x9000, scoped, tag = 'internal scratch']
  %s0 = inlined_call_operand.vmem [shape: f32[256,8], index: 0, kind: input, shape index: {}]
  %s1 = inlined_call_operand.vmem [shape: f32[16,8], index: 1, kind: input, shape index: {}]
  %s2 = inlined_call_operand.vmem [shape: f32[16,1], index: 2, kind: input, shape index: {}]
  %s3 = inlined_call_operand.vmem [shape: f32[8,16], index: 3, kind: input, shape index: {}]
  %s4 = inlined_call_operand.vmem [shape: f32[8,1], index: 4, kind: input, shape index: {}]
  %s5 = inlined_call_operand.vmem [shape: f32[4,8], index: 5, kind: input, shape index: {}]
  %s6 = inlined_call_operand.vmem [shape: f32[4,1], index: 6, kind: input, shape index: {}]
  %s7 = inlined_call_operand.hbm [shape: f32[4,256], index: 7, kind: output, shape index: {}]
  %s8 = sld [smem:[#allocation0]]
  $region61: #{tpu_custom_call.1} parent=0
    _
  %s10 = ssub.s32 1, %s8
  %s11 = scalar_select 0, %s10, %s8
  $region1: #{tpu_custom_call.1} parent=0
    #allocation2 [shape = 'u8[4096]{0}', space=vmem, size = 0x1000, scoped, tag = 'output window, operand 0']
    #allocation3 [shape = 's32[2]{0}', space=sflag, size = 0x8, scoped, tag = 'scoped memory for tpu_custom_call.1']
    %12 = vsyncpa [#allocation3], 0
    %s13 = scalar_lea.sflag [#allocation3], 1
    %14 = vsyncpa %s13, 0
    loop: start=0, step=1, limit=4
    $region2: #{tpu_custom_call.1} parent=1 // loop_pre_header
      _
    $region3: #{tpu_custom_call.1} parent=1 // loop_header
      %s16 = sphi 0, %s20
      %p17 = scmp.ge.s32.totalorder %s16, 4
      %s26 = sphi 0, %s28
      %s29 = sphi 0, %s26
      %s30 = sphi 0, %s29
      %s46 = sphi 0, %s30
      %s50 = sphi 0, %s50
      %s52 = sphi 0, %s50
      %s53 = sphi 0, %s52
      %s67 = sphi 0, %s53
      %s71 = sphi 0, %s71
      %s73 = sphi 0, %s71
      %s74 = sphi 0, %s73
      %s88 = sphi 0, %s74
      %s92 = sphi 0, %s92
      %s94 = sphi 0, %s92
      %s95 = sphi 0, %s94
      %s109 = sphi 0, %s95
      %s113 = sphi 0, %s113
      %s115 = sphi 0, %s113
      %s116 = sphi 0, %s115
      %s130 = sphi 0, %s116
      %s134 = sphi 0, %s134
      %s136 = sphi 0, %s134
      %s137 = sphi 0, %s136
      %s151 = sphi 0, %s137
      %s155 = sphi 0, %s155
      %s157 = sphi 0, %s155
      %s158 = sphi 0, %s157
      %s172 = sphi 0, %s158
      %s178 = sphi 0, %s180
      %s181 = sphi 0, %s178
      %s182 = sphi 0, %s181
      %s198 = sphi 0, %s182
    $region4: #{tpu_custom_call.1} parent=1 // loop_header_branch
      %19 = sbr.rel (%p17) target = $region8
    $region5: #{tpu_custom_call.1} parent=1 // loop_body
      %s21 = ssub.s32 %s16, 1
      %s22 = ssub.s32 %s16, 2
      %s23 = sadd.s32 %s16, 1
      %s24 = ssub.s32 %s16, %s23
      %p25 = scmp.eq.s32.totalorder %s24, 0
      %s27 = sadd.s32 %s26, 1
      %s28 = scalar_select %p25, %s26, %s27
      %p31 = pneg %p25
      %p32 = scmp.eq.s32.totalorder %s16, 1
      %p33 = por %p31, %p32
      %p34 = scmp.ne.s32.totalorder %s26, %s29
      %p35 = scmp.eq.s32.totalorder %s16, 0
      %p36 = por %p34, %p35
      %p37 = scmp.ne.s32.totalorder %s26, %s29
      %p38 = scmp.eq.s32.totalorder %s21, 1
      %p39 = por %p37, %p38
      %p40 = scmp.ne.s32.totalorder %s29, %s30
      %p41 = scmp.eq.s32.totalorder %s21, 0
      %p42 = por %p40, %p41
      %p43 = scmp.ne.s32.totalorder %s29, %s30
      %p44 = scmp.eq.s32.totalorder %s22, 1
      %p45 = por %p43, %p44
      %p47 = scmp.ne.s32.totalorder %s30, %s46
      %p48 = scmp.eq.s32.totalorder %s22, 0
      %p49 = por %p47, %p48
      %s51 = sadd.s32 %s50, 1
      %p54 = scmp.eq.s32.totalorder %s16, 1
      %p55 = scmp.ne.s32.totalorder %s50, %s52
      %p56 = scmp.eq.s32.totalorder %s16, 0
      %p57 = por %p55, %p56
      %p58 = scmp.ne.s32.totalorder %s50, %s52
      %p59 = scmp.eq.s32.totalorder %s21, 1
      %p60 = por %p58, %p59
      %p61 = scmp.ne.s32.totalorder %s52, %s53
      %p62 = scmp.eq.s32.totalorder %s21, 0
      %p63 = por %p61, %p62
      %p64 = scmp.ne.s32.totalorder %s52, %s53
      %p65 = scmp.eq.s32.totalorder %s22, 1
      %p66 = por %p64, %p65
      %p68 = scmp.ne.s32.totalorder %s53, %s67
      %p69 = scmp.eq.s32.totalorder %s22, 0
      %p70 = por %p68, %p69
      %s72 = sadd.s32 %s71, 1
      %p75 = scmp.eq.s32.totalorder %s16, 1
      %p76 = scmp.ne.s32.totalorder %s71, %s73
      %p77 = scmp.eq.s32.totalorder %s16, 0
      %p78 = por %p76, %p77
      %p79 = scmp.ne.s32.totalorder %s71, %s73
      %p80 = scmp.eq.s32.totalorder %s21, 1
      %p81 = por %p79, %p80
      %p82 = scmp.ne.s32.totalorder %s73, %s74
      %p83 = scmp.eq.s32.totalorder %s21, 0
      %p84 = por %p82, %p83
      %p85 = scmp.ne.s32.totalorder %s73, %s74
      %p86 = scmp.eq.s32.totalorder %s22, 1
      %p87 = por %p85, %p86
      %p89 = scmp.ne.s32.totalorder %s74, %s88
      %p90 = scmp.eq.s32.totalorder %s22, 0
      %p91 = por %p89, %p90
      %s93 = sadd.s32 %s92, 1
      %p96 = scmp.eq.s32.totalorder %s16, 1
      %p97 = scmp.ne.s32.totalorder %s92, %s94
      %p98 = scmp.eq.s32.totalorder %s16, 0
      %p99 = por %p97, %p98
      %p100 = scmp.ne.s32.totalorder %s92, %s94
      %p101 = scmp.eq.s32.totalorder %s21, 1
      %p102 = por %p100, %p101
      %p103 = scmp.ne.s32.totalorder %s94, %s95
      %p104 = scmp.eq.s32.totalorder %s21, 0
      %p105 = por %p103, %p104
      %p106 = scmp.ne.s32.totalorder %s94, %s95
      %p107 = scmp.eq.s32.totalorder %s22, 1
      %p108 = por %p106, %p107
      %p110 = scmp.ne.s32.totalorder %s95, %s109
      %p111 = scmp.eq.s32.totalorder %s22, 0
      %p112 = por %p110, %p111
      %s114 = sadd.s32 %s113, 1
      %p117 = scmp.eq.s32.totalorder %s16, 1
      %p118 = scmp.ne.s32.totalorder %s113, %s115
      %p119 = scmp.eq.s32.totalorder %s16, 0
      %p120 = por %p118, %p119
      %p121 = scmp.ne.s32.totalorder %s113, %s115
      %p122 = scmp.eq.s32.totalorder %s21, 1
      %p123 = por %p121, %p122
      %p124 = scmp.ne.s32.totalorder %s115, %s116
      %p125 = scmp.eq.s32.totalorder %s21, 0
      %p126 = por %p124, %p125
      %p127 = scmp.ne.s32.totalorder %s115, %s116
      %p128 = scmp.eq.s32.totalorder %s22, 1
      %p129 = por %p127, %p128
      %p131 = scmp.ne.s32.totalorder %s116, %s130
      %p132 = scmp.eq.s32.totalorder %s22, 0
      %p133 = por %p131, %p132
      %s135 = sadd.s32 %s134, 1
      %p138 = scmp.eq.s32.totalorder %s16, 1
      %p139 = scmp.ne.s32.totalorder %s134, %s136
      %p140 = scmp.eq.s32.totalorder %s16, 0
      %p141 = por %p139, %p140
      %p142 = scmp.ne.s32.totalorder %s134, %s136
      %p143 = scmp.eq.s32.totalorder %s21, 1
      %p144 = por %p142, %p143
      %p145 = scmp.ne.s32.totalorder %s136, %s137
      %p146 = scmp.eq.s32.totalorder %s21, 0
      %p147 = por %p145, %p146
      %p148 = scmp.ne.s32.totalorder %s136, %s137
      %p149 = scmp.eq.s32.totalorder %s22, 1
      %p150 = por %p148, %p149
      %p152 = scmp.ne.s32.totalorder %s137, %s151
      %p153 = scmp.eq.s32.totalorder %s22, 0
      %p154 = por %p152, %p153
      %s156 = sadd.s32 %s155, 1
      %p159 = scmp.eq.s32.totalorder %s16, 1
      %p160 = scmp.ne.s32.totalorder %s155, %s157
      %p161 = scmp.eq.s32.totalorder %s16, 0
      %p162 = por %p160, %p161
      %p163 = scmp.ne.s32.totalorder %s155, %s157
      %p164 = scmp.eq.s32.totalorder %s21, 1
      %p165 = por %p163, %p164
      %p166 = scmp.ne.s32.totalorder %s157, %s158
      %p167 = scmp.eq.s32.totalorder %s21, 0
      %p168 = por %p166, %p167
      %p169 = scmp.ne.s32.totalorder %s157, %s158
      %p170 = scmp.eq.s32.totalorder %s22, 1
      %p171 = por %p169, %p170
      %p173 = scmp.ne.s32.totalorder %s158, %s172
      %p174 = scmp.eq.s32.totalorder %s22, 0
      %p175 = por %p173, %p174
      %s176 = ssub.s32 %s16, %s23
      %p177 = scmp.eq.s32.totalorder %s176, 0
      %s179 = sadd.s32 %s178, 1
      %s180 = scalar_select %p177, %s178, %s179
      %p183 = pneg %p177
      %p184 = scmp.eq.s32.totalorder %s16, 1
      %p185 = por %p183, %p184
      %p186 = scmp.ne.s32.totalorder %s178, %s181
      %p187 = scmp.eq.s32.totalorder %s16, 0
      %p188 = por %p186, %p187
      %p189 = scmp.ne.s32.totalorder %s178, %s181
      %p190 = scmp.eq.s32.totalorder %s21, 1
      %p191 = por %p189, %p190
      %p192 = scmp.ne.s32.totalorder %s181, %s182
      %p193 = scmp.eq.s32.totalorder %s21, 0
      %p194 = por %p192, %p193
      %p195 = scmp.ne.s32.totalorder %s181, %s182
      %p196 = scmp.eq.s32.totalorder %s22, 1
      %p197 = por %p195, %p196
      %p199 = scmp.ne.s32.totalorder %s182, %s198
      %p200 = scmp.eq.s32.totalorder %s22, 0
      %p201 = por %p199, %p200
      %p202 = scmp.le.s32.totalorder 1, %s16
      %p203 = scmp.lt.s32.totalorder %s16, 3
      %p204 = pnand %p202, %p203
      %p205 = pneg %p204
      // Predicated region
      $region9: #{tpu_custom_call.1} parent=5 // pred_check
        _
      $region10: #{tpu_custom_call.1} parent=5 // pred_check_branch
        %207 = sbr.rel (%p204) target = $region12
      $region11: #{tpu_custom_call.1} parent=5 // pred_region
        %s208 = ssub.s32 %s16, 1
        // Predicated region
        $region13: #{tpu_custom_call.1} parent=11 // pred_check
          %p209 = pneg %p63
        $region14: #{tpu_custom_call.1} parent=11 // pred_check_branch
          %211 = sbr.rel (%p209) target = $region16
        $region15: #{tpu_custom_call.1} parent=11 // pred_region
          _
        $region16: #{tpu_custom_call.1} parent=11 // pred_fallthru
          _
        // Predicated region
        $region17: #{tpu_custom_call.1} parent=11 // pred_check
          %p212 = pneg %p84
        $region18: #{tpu_custom_call.1} parent=11 // pred_check_branch
          %214 = sbr.rel (%p212) target = $region20
        $region19: #{tpu_custom_call.1} parent=11 // pred_region
          _
        $region20: #{tpu_custom_call.1} parent=11 // pred_fallthru
          _
        // Predicated region
        $region21: #{tpu_custom_call.1} parent=11 // pred_check
          %p215 = pneg %p105
        $region22: #{tpu_custom_call.1} parent=11 // pred_check_branch
          %217 = sbr.rel (%p215) target = $region24
        $region23: #{tpu_custom_call.1} parent=11 // pred_region
          _
        $region24: #{tpu_custom_call.1} parent=11 // pred_fallthru
          _
        // Predicated region
        $region25: #{tpu_custom_call.1} parent=11 // pred_check
          %p218 = pneg %p126
        $region26: #{tpu_custom_call.1} parent=11 // pred_check_branch
          %220 = sbr.rel (%p218) target = $region28
        $region27: #{tpu_custom_call.1} parent=11 // pred_region
          _
        $region28: #{tpu_custom_call.1} parent=11 // pred_fallthru
          _
        // Predicated region
        $region29: #{tpu_custom_call.1} parent=11 // pred_check
          %p221 = pneg %p147
        $region30: #{tpu_custom_call.1} parent=11 // pred_check_branch
          %223 = sbr.rel (%p221) target = $region32
        $region31: #{tpu_custom_call.1} parent=11 // pred_region
          _
        $region32: #{tpu_custom_call.1} parent=11 // pred_fallthru
          _
        // Predicated region
        $region33: #{tpu_custom_call.1} parent=11 // pred_check
          %p224 = pneg %p168
        $region34: #{tpu_custom_call.1} parent=11 // pred_check_branch
          %226 = sbr.rel (%p224) target = $region36
        $region35: #{tpu_custom_call.1} parent=11 // pred_region
          _
        $region36: #{tpu_custom_call.1} parent=11 // pred_fallthru
          _
      $region12: #{tpu_custom_call.1} parent=5 // pred_fallthru
        _
      %p227 = scmp.lt.s32.totalorder %s16, 2
      // Predicated region
      $region37: #{tpu_custom_call.1} parent=5 // pred_check
        %p228 = pneg %p227
      $region38: #{tpu_custom_call.1} parent=5 // pred_check_branch
        %230 = sbr.rel (%p228) target = $region40
      $region39: #{tpu_custom_call.1} parent=5 // pred_region
        // Predicated region
        $region41: #{tpu_custom_call.1} parent=39 // pred_check
          %p231 = pneg %p36
        $region42: #{tpu_custom_call.1} parent=39 // pred_check_branch
          %233 = sbr.rel (%p231) target = $region44
        $region43: #{tpu_custom_call.1} parent=39 // pred_region
          %s234 = smul.u32 16, %s16
          %p235 = scmp.lt.s32.totalorder %s234, 31
          %s236 = scalar_select %p235, %s234, 31
          %s237 = smul.addr %s236, 8
          %s238 = scalar_lea.vmem %s0, %s237
          %s239 = smul.u32 16, %s16
        $region44: #{tpu_custom_call.1} parent=39 // pred_fallthru
          _
      $region40: #{tpu_custom_call.1} parent=5 // pred_fallthru
        _
      %p240 = scmp.le.s32.totalorder 1, %s16
      %p241 = scmp.lt.s32.totalorder %s16, 3
      %p242 = pnand %p240, %p241
      %p243 = pneg %p242
      // Predicated region
      $region45: #{tpu_custom_call.1} parent=5 // pred_check
        _
      $region46: #{tpu_custom_call.1} parent=5 // pred_check_branch
        %245 = sbr.rel (%p242) target = $region48
      $region47: #{tpu_custom_call.1} parent=5 // pred_region
        %s246 = ssub.s32 %s16, 1
        %s247 = smul.u32 16, %s21
        %p248 = scmp.lt.s32.totalorder %s247, 31
        %s249 = scalar_select %p248, %s247, 31
        %s250 = smul.addr %s249, 8
        %s251 = scalar_lea.vmem %s0, %s250
        %p252 = pneg %p42
        %p253 = pneg %p39
        %p254 = pneg %p63
        %p255 = pneg %p60
        %p256 = pneg %p84
        %p257 = pneg %p81
        %p258 = pneg %p105
        %p259 = pneg %p102
        %p260 = pneg %p126
        %p261 = pneg %p123
        %p262 = pneg %p147
        %p263 = pneg %p144
        %p264 = pneg %p168
        %p265 = pneg %p165
        %p266 = pneg %p194
        %p267 = pneg %p191
        %s268 = sand.u32 %s181, 1
        %s269 = scalar_lea.sflag [#allocation3], %s268
        %s270 = sand.u32 %s181, 1
        %s271 = smul.addr %s270, 4
        %s272 = scalar_lea.vmem [#allocation2], %s271
        %s273 = smul.u32 16, %s21
        %p274 = scmp.lt.s32.totalorder %s273, 31
        %s275 = scalar_select %p274, %s273, 31
        %s276 = smul.addr %s275, 8
        %s277 = scalar_lea.vmem %s0, %s276
        %s278 = smul.u32 16, %s21
        %v279 = vld [vmem:[%s277] sm:$0xff]
        %v280 = vld [vmem:[%s277 + $0x8] sm:$0xff]
        %v281 = vld [vmem:[%s277 + $0x10] sm:$0xff]
        %v282 = vld [vmem:[%s277 + $0x18] sm:$0xff]
        %v283 = vld [vmem:[%s277 + $0x20] sm:$0xff]
        %v284 = vld [vmem:[%s277 + $0x28] sm:$0xff]
        %v285 = vld [vmem:[%s277 + $0x30] sm:$0xff]
        %v286 = vld [vmem:[%s277 + $0x38] sm:$0xff]
        %v287 = vld [vmem:[%s277 + $0x40] sm:$0xff]
        %v288 = vld [vmem:[%s277 + $0x48] sm:$0xff]
        %v289 = vld [vmem:[%s277 + $0x50] sm:$0xff]
        %v290 = vld [vmem:[%s277 + $0x58] sm:$0xff]
        %v291 = vld [vmem:[%s277 + $0x60] sm:$0xff]
        %v292 = vld [vmem:[%s277 + $0x68] sm:$0xff]
        %v293 = vld [vmem:[%s277 + $0x70] sm:$0xff]
        %v294 = vld [vmem:[%s277 + $0x78] sm:$0xff]
        %v295 = vld [vmem:[%s1] sm:$0xff]
        %v296 = vld [vmem:[%s1 + $0x8] sm:$0xff]
        %v297 = vld [vmem:[%s2] sm:$0xff]
        %v298 = vld [vmem:[%s2 + $0x8] sm:$0xff]
        %300 = vset.pattern.permute.xlu0 0
        %301 = vperm.xlu0 %300, %v297
        %v302 = vpop.permute.xlu0 %301
        %305 = vset.pattern.permute.xlu0 0
        %306 = vperm.xlu0 %305, %v298
        %v307 = vpop.permute.xlu0 %306
        %vm309 = vcmask 64512
        %v311 = vsel %vm309, %v295, 0
        %v314 = vsel %vm309, %v296, 0
        %v317 = vsel %vm309, %v279, 0
        %v320 = vsel %vm309, %v280, 0
        %v323 = vsel %vm309, %v281, 0
        %v326 = vsel %vm309, %v282, 0
        %v329 = vsel %vm309, %v283, 0
        %v332 = vsel %vm309, %v284, 0
        %v335 = vsel %vm309, %v285, 0
        %v338 = vsel %vm309, %v286, 0
        %v341 = vsel %vm309, %v287, 0
        %v344 = vsel %vm309, %v288, 0
        %v347 = vsel %vm309, %v289, 0
        %v350 = vsel %vm309, %v290, 0
        %v353 = vsel %vm309, %v291, 0
        %v356 = vsel %vm309, %v292, 0
        %v359 = vsel %vm309, %v293, 0
        %v362 = vsel %vm309, %v294, 0
        %364 = vmatpush.xpose.msra.mxu0 %v362
        %365 = vmatpush.xpose.msra.mxu0 %v359
        %366 = vmatpush.xpose.msra.mxu0 %v356
        %367 = vmatpush.xpose.msra.mxu0 %v353
        %368 = vmatpush.xpose.msra.mxu0 %v350
        %369 = vmatpush.xpose.msra.mxu0 %v347
        %370 = vmatpush.xpose.msra.mxu0 %v344
        %371 = vmatpush.xpose.msra.mxu0 %v341
        %372 = vmatpush.xpose.msra.mxu0 %v338
        %373 = vmatpush.xpose.msra.mxu0 %v335
        %374 = vmatpush.xpose.msra.mxu0 %v332
        %375 = vmatpush.xpose.msra.mxu0 %v329
        %376 = vmatpush.xpose.msra.mxu0 %v326
        %377 = vmatpush.xpose.msra.mxu0 %v323
        %378 = vmatpush.xpose.msra.mxu0 %v320
        %379 = vmatpush.xpose.msra.mxu0 %v317
        %380 = vmatmul.f32.gmra.mxu0 %v311
        %v381 = vpop.f32.mrf.mxu0
        %v382 = vadd.f32 %v302, %v381
        %383 = vmatmul.f32.gmra.mxu0 %v314
        %v384 = vpop.f32.mrf.mxu0
        %v385 = vadd.f32 %v307, %v384
        %386 = vdwg.mxu0
        %v387 = vmax.f32 %v382, 0.0
        %v388 = vmax.f32 %v385, 0.0
        %v389 = vld [vmem:[%s3] sm:$0xff]
        %v390 = vld [vmem:[%s4] sm:$0xff]
        %392 = vset.pattern.permute.xlu0 0
        %393 = vperm.xlu0 %392, %v390
        %v394 = vpop.permute.xlu0 %393
        %vm396 = vcmask 130048
        %v398 = vsel %vm396, %v389, 0
        %400 = vmatpush.msra.mxu0 0.0
        %401 = vmatpush.msra.mxu0 0.0
        %402 = vmatpush.msra.mxu0 0.0
        %403 = vmatpush.msra.mxu0 0.0
        %404 = vmatpush.msra.mxu0 0.0
        %405 = vmatpush.msra.mxu0 0.0
        %406 = vmatpush.msra.mxu0 0.0
        %407 = vmatpush.msra.mxu0 0.0
        %408 = vmatpush.msra.mxu0 0.0
        %409 = vmatpush.msra.mxu0 0.0
        %410 = vmatpush.msra.mxu0 0.0
        %411 = vmatpush.msra.mxu0 0.0
        %412 = vmatpush.msra.mxu0 0.0
        %413 = vmatpush.msra.mxu0 0.0
        %414 = vmatpush.msra.mxu0 %v388
        %415 = vmatpush.msra.mxu0 %v387
        %416 = vmatmul.f32.gmra.mxu0 %v398
        %v417 = vpop.f32.mrf.mxu0
        %v418 = vadd.f32 %v394, %v417
        %419 = vdwg.mxu0
        %v420 = vmax.f32 %v418, 0.0
        %v421 = vld [vmem:[%s5] sm:$0xf]
        %v422 = vld [vmem:[%s6] sm:$0xf]
        %424 = vset.pattern.permute.xlu0 0
        %425 = vperm.xlu0 %424, %v422
        %v426 = vpop.permute.xlu0 %425
        %v429 = vsel %vm309, %v421, 0
        %431 = vmatpush.msra.mxu0 0.0
        %432 = vmatpush.msra.mxu0 0.0
        %433 = vmatpush.msra.mxu0 0.0
        %434 = vmatpush.msra.mxu0 0.0
        %435 = vmatpush.msra.mxu0 0.0
        %436 = vmatpush.msra.mxu0 0.0
        %437 = vmatpush.msra.mxu0 0.0
        %438 = vmatpush.msra.mxu0 0.0
        %439 = vmatpush.msra.mxu0 0.0
        %440 = vmatpush.msra.mxu0 0.0
        %441 = vmatpush.msra.mxu0 0.0
        %442 = vmatpush.msra.mxu0 0.0
        %443 = vmatpush.msra.mxu0 0.0
        %444 = vmatpush.msra.mxu0 0.0
        %445 = vmatpush.msra.mxu0 0.0
        %446 = vmatpush.msra.mxu0 %v420
        %447 = vmatmul.f32.gmra.mxu0 %v429
        %v448 = vpop.f32.mrf.mxu0
        %v449 = vadd.f32 %v426, %v448
        %450 = vdwg.mxu0
        %451 = vst [vmem:[%s272] sm:$0xf] %v449
        %s452 = sand.u32 %s181, 1
        %s453 = scalar_lea.sflag [#allocation3], %s452
        %s454 = sand.u32 %s181, 1
        %s455 = smul.addr %s454, 4
        %s456 = scalar_lea.vmem [#allocation2], %s455
        // Predicated region
        $region49: #{tpu_custom_call.1} parent=47 // pred_check
          %p457 = pneg %p191
        $region50: #{tpu_custom_call.1} parent=47 // pred_check_branch
          %459 = sbr.rel (%p457) target = $region52
        $region51: #{tpu_custom_call.1} parent=47 // pred_region
          %461 = vsyncadd %s453, 0
          %s462 = smul.addr %s21, 4
          %s463 = scalar_lea.hbm %s7, %s462
          %s465 = sshll.u32 %s456, 4
          %s466 = int_to_ptr.vmem [resolvable:$true] %s465
          %s467 = sshll.u32 %s463, 4
          %s468 = int_to_ptr.hbm [resolvable:$true] %s467
          %470 = dma.vmem_to_hbm [thread:$0]  %s466, 64, %s468, %s453
        $region52: #{tpu_custom_call.1} parent=47 // pred_fallthru
          _
      $region48: #{tpu_custom_call.1} parent=5 // pred_fallthru
        _
      %p471 = scmp.le.s32.totalorder 2, %s16
      // Predicated region
      $region53: #{tpu_custom_call.1} parent=5 // pred_check
        %p472 = pneg %p471
      $region54: #{tpu_custom_call.1} parent=5 // pred_check_branch
        %474 = sbr.rel (%p472) target = $region56
      $region55: #{tpu_custom_call.1} parent=5 // pred_region
        %s475 = ssub.s32 %s16, 2
        // Predicated region
        $region57: #{tpu_custom_call.1} parent=55 // pred_check
          %p476 = pneg %p197
        $region58: #{tpu_custom_call.1} parent=55 // pred_check_branch
          %478 = sbr.rel (%p476) target = $region60
        $region59: #{tpu_custom_call.1} parent=55 // pred_region
          %s479 = sand.u32 %s182, 1
          %s480 = scalar_lea.sflag [#allocation3], %s479
          %s481 = sand.u32 %s182, 1
          %s482 = smul.addr %s481, 4
          %s483 = scalar_lea.vmem [#allocation2], %s482
          %485 = dma.done %s480, 64
        $region60: #{tpu_custom_call.1} parent=55 // pred_fallthru
          _
      $region56: #{tpu_custom_call.1} parent=5 // pred_fallthru
        _
    $region6: #{tpu_custom_call.1} parent=1 // loop_footer
      %s20 = sadd.s32 1, %s16
    $region7: #{tpu_custom_call.1} parent=1 // loop_footer_branch
      %15 = sbr.rel target = $region3
    $region8: #{tpu_custom_call.1} parent=1 // loop_exit
      _
    %486 = vsyncpa [#allocation3], 1
    %s487 = scalar_lea.sflag [#allocation3], 1
    %488 = vsyncpa %s487, 1

</llo_original>
